<compile_context>
chip_gen: v5e
topology: v5e:2x2
jax: 0.10.0
libtpu: 0.0.40
codegen_flags: <defaults>
</compile_context>

<pallas_src>
import functools

import jax
import jax.numpy as jnp
from jax import lax
from jax.experimental import pallas as pl
from jax.experimental.pallas import tpu as pltpu

LANE = 128       # lane width (hidden dim padded to this once, outside the hot path)
SUB_ROWS = 256   # inner sub-block rows (multiple of 8 sublanes)


def _round_up(x, m):
    return ((x + m - 1) // m) * m


def mlp_kernel(x_ref, w1_ref, b1_ref, w2_ref, o_ref, *, sub):
    # Parameters are tiny and VMEM-resident (constant index_maps); load once per step.
    w1 = w1_ref[...]
    b1 = b1_ref[...]
    w2 = w2_ref[...]
    n_sub = x_ref.shape[0] // sub  # static

    def body(s, carry):
        r = pl.multiple_of(s * sub, sub)
        xs = x_ref[pl.ds(r, sub), :]
        # Layer 1 on the MXU with f32 accumulate; bias + ReLU on the VPU in f32.
        h = jnp.dot(xs, w1, preferred_element_type=jnp.float32)
        h = jnp.maximum(h + b1, 0.0)
        # Layer 2: b2 rides in the last row of w2 (constant-1 hidden unit), so this is
        # a single MXU op with no epilogue.  Output block is only out_size lanes wide.
        out = jnp.dot(h.astype(w2.dtype), w2, preferred_element_type=jnp.float32)
        o_ref[pl.ds(r, sub), :] = out.astype(o_ref.dtype)
        return carry

    lax.fori_loop(0, n_sub, body, 0, unroll=True)


def pack_params(w1, b1, w2, b2, *, operand_dtype=jnp.float32):
    """One-time parameter packing (outside the hot path):
       * hidden dim padded to a 128-lane multiple (+1 spare slot for the constant unit),
       * b2 folded into W2 through a constant-1 hidden unit (b1 padding slot = 1.0),
       * W1/W2 optionally stored bf16 (v6e/v7x); b1 stays f32 (f32 VPU epilogue)."""
    in_size, hidden = w1.shape
    out_size = w2.shape[1]
    hp = _round_up(hidden + 1, LANE)   # +1 guarantees a slot for the constant unit

    w1p = jnp.zeros((in_size, hp), operand_dtype).at[:, :hidden].set(
        w1.astype(operand_dtype))
    b1p = jnp.zeros((1, hp), jnp.float32).at[:, :hidden].set(
        b1.reshape(1, hidden).astype(jnp.float32))
    b1p = b1p.at[0, hp - 1].set(1.0)   # ReLU(0*x + 1) == 1  -> constant hidden unit
    w2p = jnp.zeros((hp, out_size), operand_dtype).at[:hidden, :].set(
        w2.astype(operand_dtype))
    w2p = w2p.at[hp - 1, :].set(b2.reshape(out_size).astype(operand_dtype))
    return w1p, b1p, w2p


@functools.partial(jax.jit, static_argnames=("tb",))
def policy_network_forward(x, w1p, b1p, w2p, *, tb=1024):
    """x: (B, input_size); (w1p, b1p, w2p) from pack_params.  Returns (B, out_size) f32."""
    B, in_size = x.shape
    hp = w1p.shape[1]
    out_size = w2p.shape[1]
    x = x.astype(w1p.dtype)   # match operand dtype (f32 or bf16)

    # Batch tile: >=2 grid steps when possible (feeds both TCs on v7x), multiple of 8
    # sublanes, and — when large enough — a multiple of the inner sub-block size so the
    # unrolled inner loop divides evenly.
    tb = min(tb, max(8, _round_up(pl.cdiv(B, 2), 8)))
    if tb >= SUB_ROWS:
        tb = _round_up(tb, SUB_ROWS)
        sub = SUB_ROWS
    else:
        sub = tb
    grid = (pl.cdiv(B, tb),)   # last tile may be partial: OOB writes are dropped

    w_itemsize = jnp.dtype(w1p.dtype).itemsize
    cost = pl.CostEstimate(
        flops=2 * B * (in_size * hp + hp * out_size),
        transcendentals=0,
        bytes_accessed=(B * in_size * w_itemsize          # x read
                        + w1p.size * w_itemsize           # weights
                        + b1p.size * 4
                        + w2p.size * w_itemsize
                        + B * out_size * 4),              # narrow output writeback
    )

    return pl.pallas_call(
        functools.partial(mlp_kernel, sub=sub),
        out_shape=jax.ShapeDtypeStruct((B, out_size), jnp.float32),
        grid_spec=pltpu.PrefetchScalarGridSpec(
            num_scalar_prefetch=0,
            grid=grid,
            in_specs=[
                pl.BlockSpec((tb, in_size), lambda i: (i, 0)),     # x: streamed per tile
                pl.BlockSpec((in_size, hp), lambda i: (0, 0)),     # W1: VMEM-resident
                pl.BlockSpec((1, hp),       lambda i: (0, 0)),     # b1: VMEM-resident
                pl.BlockSpec((hp, out_size), lambda i: (0, 0)),    # W2 (+b2): VMEM-resident
            ],
            out_specs=pl.BlockSpec((tb, out_size), lambda i: (i, 0)),  # narrow output
        ),
        compiler_params=pltpu.CompilerParams(
            dimension_semantics=("parallel",),   # shard batch tiles across TCs (v7x)
        ),
        cost_estimate=cost,
    )(x, w1p, b1p, w2p)


def init_params(key, input_size, hidden_size, output_size, dtype=jnp.float32):
    """Deterministic init mimicking torch.nn.Linear default (uniform +/- 1/sqrt(fan_in))."""
    k1, k2, k3, k4 = jax.random.split(key, 4)
    bound1 = 1.0 / jnp.sqrt(jnp.array(input_size, dtype))
    bound2 = 1.0 / jnp.sqrt(jnp.array(hidden_size, dtype))
    w1 = jax.random.uniform(k1, (input_size, hidden_size), dtype, -bound1, bound1)
    b1 = jax.random.uniform(k2, (1, hidden_size), dtype, -bound1, bound1)
    w2 = jax.random.uniform(k3, (hidden_size, output_size), dtype, -bound2, bound2)
    b2 = jax.random.uniform(k4, (1, output_size), dtype, -bound2, bound2)
    return w1, b1, w2, b2


if __name__ == "__main__":
    key = jax.random.PRNGKey(0)
    # This network only earns a kernel when many environments are batched together,
    # so the demo uses a batched set of observations (grid = 2 tiles, one per TC on v7x).
    batch = 1024
    input_size = 4        # small observation vector
    hidden_size = 10      # fixed by the module definition
    output_size = 2       # two discrete actions

    kx, kp = jax.random.split(key)
    x = jax.random.normal(kx, (batch, input_size), jnp.float32)
    w1, b1, w2, b2 = init_params(kp, input_size, hidden_size, output_size)

    # Reference in plain JAX (same math as the PyTorch forward).
    ref = jnp.maximum(x @ w1 + b1, 0.0) @ w2 + b2

    # f32 path (matches the torch reference tightly).
    w1p, b1p, w2p = pack_params(w1, b1, w2, b2)
    out = policy_network_forward(x, w1p, b1p, w2p)
    jax.block_until_ready(out)
    assert out.shape == (batch, output_size)
    assert jnp.allclose(out, ref, atol=1e-4, rtol=1e-4)

    # bf16 operand/storage path (v6e/v7x recommendation): halves remaining HBM reads.
    w1b, b1b, w2b = pack_params(w1, b1, w2, b2, operand_dtype=jnp.bfloat16)
    out_bf16 = policy_network_forward(x, w1b, b1b, w2b)
    jax.block_until_ready(out_bf16)
    assert out_bf16.shape == (batch, output_size)
    assert jnp.allclose(out_bf16, ref, atol=5e-2, rtol=5e-2)

    print("KERNEL_OK")
</pallas_src>

<mosaic_0001>
module attributes {stable_mosaic.version = 11 : i64} {
  func.func @mlp_kernel(%arg0: i32, %arg1: memref<512x4xf32, #tpu.memory_space<vmem>>, %arg2: memref<4x128xf32, #tpu.memory_space<vmem>>, %arg3: memref<1x128xf32, #tpu.memory_space<vmem>>, %arg4: memref<128x2xf32, #tpu.memory_space<vmem>>, %arg5: memref<512x2xf32, #tpu.memory_space<vmem>>) attributes {dimension_semantics = [#tpu.dimension_semantics<parallel>], iteration_bounds = array<i64: 2>, scalar_prefetch = 0 : i64, scratch_operands = 0 : i64, tpu.core_type = #tpu.core_type<tc>, window_params = [{transform_indices = @transform_0, window_bounds = array<i64: 512, 4>}, {pipeline_mode = #tpu.pipeline_mode<synchronous>, transform_indices = @transform_1, window_bounds = array<i64: 4, 128>}, {pipeline_mode = #tpu.pipeline_mode<synchronous>, transform_indices = @transform_2, window_bounds = array<i64: 1, 128>}, {pipeline_mode = #tpu.pipeline_mode<synchronous>, transform_indices = @transform_3, window_bounds = array<i64: 128, 2>}, {transform_indices = @transform_4, window_bounds = array<i64: 512, 2>}]} {
    %c0 = arith.constant 0 : index
    %c0_0 = arith.constant 0 : index
    %0 = vector.load %arg2[%c0, %c0_0] : memref<4x128xf32, #tpu.memory_space<vmem>>, vector<4x128xf32>
    %c0_1 = arith.constant 0 : index
    %c0_2 = arith.constant 0 : index
    %1 = vector.load %arg3[%c0_1, %c0_2] : memref<1x128xf32, #tpu.memory_space<vmem>>, vector<1x128xf32>
    %c0_3 = arith.constant 0 : index
    %c0_4 = arith.constant 0 : index
    %2 = vector.load %arg4[%c0_3, %c0_4] : memref<128x2xf32, #tpu.memory_space<vmem>>, vector<128x2xf32>
    %c0_i32 = arith.constant 0 : i32
    %c256_i32 = arith.constant 256 : i32
    %3 = arith.muli %c0_i32, %c256_i32 : i32
    %4 = tpu.assume_multiple %3, 256 : i32
    %5 = arith.index_cast %4 : i32 to index
    %c0_5 = arith.constant 0 : index
    %6 = vector.load %arg1[%5, %c0_5] : memref<512x4xf32, #tpu.memory_space<vmem>>, vector<256x4xf32>
    %cst = arith.constant dense<0.000000e+00> : vector<256x128xf32>
    %7 = tpu.matmul %6, %0, %cst {dimension_numbers = #tpu.dot_dimension_numbers<[1], [0], [0], [1], [0, 0, 1, 1], [], []>} : vector<256x4xf32>, vector<4x128xf32>, vector<256x128xf32> -> vector<256x128xf32>
    %8 = vector.broadcast %1 : vector<1x128xf32> to vector<256x128xf32>
    %9 = arith.addf %7, %8 : vector<256x128xf32>
    %cst_6 = arith.constant 0.000000e+00 : f32
    %10 = vector.broadcast %cst_6 : f32 to vector<256x128xf32>
    %11 = arith.maximumf %9, %10 : vector<256x128xf32>
    %cst_7 = arith.constant dense<0.000000e+00> : vector<256x2xf32>
    %12 = tpu.matmul %11, %2, %cst_7 {dimension_numbers = #tpu.dot_dimension_numbers<[1], [0], [0], [1], [0, 0, 1, 1], [], []>} : vector<256x128xf32>, vector<128x2xf32>, vector<256x2xf32> -> vector<256x2xf32>
    %13 = arith.index_cast %4 : i32 to index
    %c0_8 = arith.constant 0 : index
    %14 = vector.load %arg5[%13, %c0_8] : memref<512x2xf32, #tpu.memory_space<vmem>>, vector<256x2xf32>
    tpu.vector_store %arg5[%13, %c0_8], %12 {strides = array<i32>} : memref<512x2xf32, #tpu.memory_space<vmem>>, vector<256x2xf32>,
    %c1_i32 = arith.constant 1 : i32
    %c256_i32_9 = arith.constant 256 : i32
    %15 = arith.muli %c1_i32, %c256_i32_9 : i32
    %16 = tpu.assume_multiple %15, 256 : i32
    %17 = arith.index_cast %16 : i32 to index
    %c0_10 = arith.constant 0 : index
    %18 = vector.load %arg1[%17, %c0_10] : memref<512x4xf32, #tpu.memory_space<vmem>>, vector<256x4xf32>
    %cst_11 = arith.constant dense<0.000000e+00> : vector<256x128xf32>
    %19 = tpu.matmul %18, %0, %cst_11 {dimension_numbers = #tpu.dot_dimension_numbers<[1], [0], [0], [1], [0, 0, 1, 1], [], []>} : vector<256x4xf32>, vector<4x128xf32>, vector<256x128xf32> -> vector<256x128xf32>
    %20 = vector.broadcast %1 : vector<1x128xf32> to vector<256x128xf32>
    %21 = arith.addf %19, %20 : vector<256x128xf32>
    %cst_12 = arith.constant 0.000000e+00 : f32
    %22 = vector.broadcast %cst_12 : f32 to vector<256x128xf32>
    %23 = arith.maximumf %21, %22 : vector<256x128xf32>
    %cst_13 = arith.constant dense<0.000000e+00> : vector<256x2xf32>
    %24 = tpu.matmul %23, %2, %cst_13 {dimension_numbers = #tpu.dot_dimension_numbers<[1], [0], [0], [1], [0, 0, 1, 1], [], []>} : vector<256x128xf32>, vector<128x2xf32>, vector<256x2xf32> -> vector<256x2xf32>
    %25 = arith.index_cast %16 : i32 to index
    %c0_14 = arith.constant 0 : index
    %26 = vector.load %arg5[%25, %c0_14] : memref<512x2xf32, #tpu.memory_space<vmem>>, vector<256x2xf32>
    tpu.vector_store %arg5[%25, %c0_14], %24 {strides = array<i32>} : memref<512x2xf32, #tpu.memory_space<vmem>>, vector<256x2xf32>,
    %c2_i32 = arith.constant 2 : i32
    return
  }
  func.func @transform_0(%arg0: i32) -> (i32, i32) {
    %c0_i32 = arith.constant 0 : i32
    %c0_i32_0 = arith.constant 0 : i32
    return %arg0, %c0_i32 : i32, i32
  }
  func.func @transform_1(%arg0: i32) -> (i32, i32) {
    %c0_i32 = arith.constant 0 : i32
    %c0_i32_0 = arith.constant 0 : i32
    %c0_i32_1 = arith.constant 0 : i32
    return %c0_i32, %c0_i32_0 : i32, i32
  }
  func.func @transform_2(%arg0: i32) -> (i32, i32) {
    %c0_i32 = arith.constant 0 : i32
    %c0_i32_0 = arith.constant 0 : i32
    %c0_i32_1 = arith.constant 0 : i32
    return %c0_i32, %c0_i32_0 : i32, i32
  }
  func.func @transform_3(%arg0: i32) -> (i32, i32) {
    %c0_i32 = arith.constant 0 : i32
    %c0_i32_0 = arith.constant 0 : i32
    %c0_i32_1 = arith.constant 0 : i32
    return %c0_i32, %c0_i32_0 : i32, i32
  }
  func.func @transform_4(%arg0: i32) -> (i32, i32) {
    %c0_i32 = arith.constant 0 : i32
    %c0_i32_0 = arith.constant 0 : i32
    return %arg0, %c0_i32 : i32, i32
  }
}

</mosaic_0001>

<llo_original>
// kernel: policy_network_forward.1
$region0: #{policy_network_forward.1}
  #allocation0 [shape = 'u32[]', space=smem, size = 0x4, offset = 0x4, fixed_abs, tag = 'smem constant byte address 0x4 - core index']
  #allocation1 [shape = 'u32[72,128]{1,0:T(1,128)}', space=vmem, size = 0x9000, scoped, tag = 'internal scratch']
  %s0 = inlined_call_operand.vmem [shape: f32[1024,4], index: 0, kind: input, shape index: {}]
  %s1 = inlined_call_operand.vmem [shape: f32[4,128], index: 1, kind: input, shape index: {}]
  %s2 = inlined_call_operand.vmem [shape: f32[1,128], index: 2, kind: input, shape index: {}]
  %s3 = inlined_call_operand.vmem [shape: f32[128,2], index: 3, kind: input, shape index: {}]
  %s4 = inlined_call_operand.vmem [shape: f32[1024,2], index: 4, kind: output, shape index: {}]
  %s5 = sld [smem:[#allocation0]]
  $region49: #{policy_network_forward.1} parent=0
    _
  %s7 = ssub.s32 1, %s5
  %s8 = scalar_select 0, %s7, %s5
  loop: start=0, step=1, limit=4
  $region2: #{policy_network_forward.1} parent=0 // loop_pre_header
    _
  $region3: #{policy_network_forward.1} parent=0 // loop_header
    %s10 = sphi 0, %s14
    %p11 = scmp.ge.s32.totalorder %s10, 4
    %s20 = sphi 0, %s22
    %s23 = sphi 0, %s20
    %s24 = sphi 0, %s23
    %s40 = sphi 0, %s24
    %s44 = sphi 0, %s44
    %s46 = sphi 0, %s44
    %s47 = sphi 0, %s46
    %s61 = sphi 0, %s47
    %s65 = sphi 0, %s65
    %s67 = sphi 0, %s65
    %s68 = sphi 0, %s67
    %s82 = sphi 0, %s68
    %s86 = sphi 0, %s86
    %s88 = sphi 0, %s86
    %s89 = sphi 0, %s88
    %s103 = sphi 0, %s89
    %s109 = sphi 0, %s111
    %s112 = sphi 0, %s109
    %s113 = sphi 0, %s112
    %s129 = sphi 0, %s113
  $region4: #{policy_network_forward.1} parent=0 // loop_header_branch
    %13 = sbr.rel (%p11) target = $region8
  $region5: #{policy_network_forward.1} parent=0 // loop_body
    %s15 = ssub.s32 %s10, 1
    %s16 = ssub.s32 %s10, 2
    %s17 = sadd.s32 %s10, 1
    %s18 = ssub.s32 %s10, %s17
    %p19 = scmp.eq.s32.totalorder %s18, 0
    %s21 = sadd.s32 %s20, 1
    %s22 = scalar_select %p19, %s20, %s21
    %p25 = pneg %p19
    %p26 = scmp.eq.s32.totalorder %s10, 1
    %p27 = por %p25, %p26
    %p28 = scmp.ne.s32.totalorder %s20, %s23
    %p29 = scmp.eq.s32.totalorder %s10, 0
    %p30 = por %p28, %p29
    %p31 = scmp.ne.s32.totalorder %s20, %s23
    %p32 = scmp.eq.s32.totalorder %s15, 1
    %p33 = por %p31, %p32
    %p34 = scmp.ne.s32.totalorder %s23, %s24
    %p35 = scmp.eq.s32.totalorder %s15, 0
    %p36 = por %p34, %p35
    %p37 = scmp.ne.s32.totalorder %s23, %s24
    %p38 = scmp.eq.s32.totalorder %s16, 1
    %p39 = por %p37, %p38
    %p41 = scmp.ne.s32.totalorder %s24, %s40
    %p42 = scmp.eq.s32.totalorder %s16, 0
    %p43 = por %p41, %p42
    %s45 = sadd.s32 %s44, 1
    %p48 = scmp.eq.s32.totalorder %s10, 1
    %p49 = scmp.ne.s32.totalorder %s44, %s46
    %p50 = scmp.eq.s32.totalorder %s10, 0
    %p51 = por %p49, %p50
    %p52 = scmp.ne.s32.totalorder %s44, %s46
    %p53 = scmp.eq.s32.totalorder %s15, 1
    %p54 = por %p52, %p53
    %p55 = scmp.ne.s32.totalorder %s46, %s47
    %p56 = scmp.eq.s32.totalorder %s15, 0
    %p57 = por %p55, %p56
    %p58 = scmp.ne.s32.totalorder %s46, %s47
    %p59 = scmp.eq.s32.totalorder %s16, 1
    %p60 = por %p58, %p59
    %p62 = scmp.ne.s32.totalorder %s47, %s61
    %p63 = scmp.eq.s32.totalorder %s16, 0
    %p64 = por %p62, %p63
    %s66 = sadd.s32 %s65, 1
    %p69 = scmp.eq.s32.totalorder %s10, 1
    %p70 = scmp.ne.s32.totalorder %s65, %s67
    %p71 = scmp.eq.s32.totalorder %s10, 0
    %p72 = por %p70, %p71
    %p73 = scmp.ne.s32.totalorder %s65, %s67
    %p74 = scmp.eq.s32.totalorder %s15, 1
    %p75 = por %p73, %p74
    %p76 = scmp.ne.s32.totalorder %s67, %s68
    %p77 = scmp.eq.s32.totalorder %s15, 0
    %p78 = por %p76, %p77
    %p79 = scmp.ne.s32.totalorder %s67, %s68
    %p80 = scmp.eq.s32.totalorder %s16, 1
    %p81 = por %p79, %p80
    %p83 = scmp.ne.s32.totalorder %s68, %s82
    %p84 = scmp.eq.s32.totalorder %s16, 0
    %p85 = por %p83, %p84
    %s87 = sadd.s32 %s86, 1
    %p90 = scmp.eq.s32.totalorder %s10, 1
    %p91 = scmp.ne.s32.totalorder %s86, %s88
    %p92 = scmp.eq.s32.totalorder %s10, 0
    %p93 = por %p91, %p92
    %p94 = scmp.ne.s32.totalorder %s86, %s88
    %p95 = scmp.eq.s32.totalorder %s15, 1
    %p96 = por %p94, %p95
    %p97 = scmp.ne.s32.totalorder %s88, %s89
    %p98 = scmp.eq.s32.totalorder %s15, 0
    %p99 = por %p97, %p98
    %p100 = scmp.ne.s32.totalorder %s88, %s89
    %p101 = scmp.eq.s32.totalorder %s16, 1
    %p102 = por %p100, %p101
    %p104 = scmp.ne.s32.totalorder %s89, %s103
    %p105 = scmp.eq.s32.totalorder %s16, 0
    %p106 = por %p104, %p105
    %s107 = ssub.s32 %s10, %s17
    %p108 = scmp.eq.s32.totalorder %s107, 0
    %s110 = sadd.s32 %s109, 1
    %s111 = scalar_select %p108, %s109, %s110
    %p114 = pneg %p108
    %p115 = scmp.eq.s32.totalorder %s10, 1
    %p116 = por %p114, %p115
    %p117 = scmp.ne.s32.totalorder %s109, %s112
    %p118 = scmp.eq.s32.totalorder %s10, 0
    %p119 = por %p117, %p118
    %p120 = scmp.ne.s32.totalorder %s109, %s112
    %p121 = scmp.eq.s32.totalorder %s15, 1
    %p122 = por %p120, %p121
    %p123 = scmp.ne.s32.totalorder %s112, %s113
    %p124 = scmp.eq.s32.totalorder %s15, 0
    %p125 = por %p123, %p124
    %p126 = scmp.ne.s32.totalorder %s112, %s113
    %p127 = scmp.eq.s32.totalorder %s16, 1
    %p128 = por %p126, %p127
    %p130 = scmp.ne.s32.totalorder %s113, %s129
    %p131 = scmp.eq.s32.totalorder %s16, 0
    %p132 = por %p130, %p131
    %p133 = scmp.le.s32.totalorder 1, %s10
    %p134 = scmp.lt.s32.totalorder %s10, 3
    %p135 = pnand %p133, %p134
    %p136 = pneg %p135
    // Predicated region
    $region9: #{policy_network_forward.1} parent=5 // pred_check
      _
    $region10: #{policy_network_forward.1} parent=5 // pred_check_branch
      %138 = sbr.rel (%p135) target = $region12
    $region11: #{policy_network_forward.1} parent=5 // pred_region
      %s139 = ssub.s32 %s10, 1
      // Predicated region
      $region13: #{policy_network_forward.1} parent=11 // pred_check
        %p140 = pneg %p57
      $region14: #{policy_network_forward.1} parent=11 // pred_check_branch
        %142 = sbr.rel (%p140) target = $region16
      $region15: #{policy_network_forward.1} parent=11 // pred_region
        _
      $region16: #{policy_network_forward.1} parent=11 // pred_fallthru
        _
      // Predicated region
      $region17: #{policy_network_forward.1} parent=11 // pred_check
        %p143 = pneg %p78
      $region18: #{policy_network_forward.1} parent=11 // pred_check_branch
        %145 = sbr.rel (%p143) target = $region20
      $region19: #{policy_network_forward.1} parent=11 // pred_region
        _
      $region20: #{policy_network_forward.1} parent=11 // pred_fallthru
        _
      // Predicated region
      $region21: #{policy_network_forward.1} parent=11 // pred_check
        %p146 = pneg %p99
      $region22: #{policy_network_forward.1} parent=11 // pred_check_branch
        %148 = sbr.rel (%p146) target = $region24
      $region23: #{policy_network_forward.1} parent=11 // pred_region
        _
      $region24: #{policy_network_forward.1} parent=11 // pred_fallthru
        _
    $region12: #{policy_network_forward.1} parent=5 // pred_fallthru
      _
    %p149 = scmp.lt.s32.totalorder %s10, 2
    // Predicated region
    $region25: #{policy_network_forward.1} parent=5 // pred_check
      %p150 = pneg %p149
    $region26: #{policy_network_forward.1} parent=5 // pred_check_branch
      %152 = sbr.rel (%p150) target = $region28
    $region27: #{policy_network_forward.1} parent=5 // pred_region
      // Predicated region
      $region29: #{policy_network_forward.1} parent=27 // pred_check
        %p153 = pneg %p30
      $region30: #{policy_network_forward.1} parent=27 // pred_check_branch
        %155 = sbr.rel (%p153) target = $region32
      $region31: #{policy_network_forward.1} parent=27 // pred_region
        %s156 = smul.u32 64, %s10
        %p157 = scmp.lt.s32.totalorder %s156, 127
        %s158 = scalar_select %p157, %s156, 127
        %s159 = smul.addr %s158, 8
        %s160 = scalar_lea.vmem %s0, %s159
        %s161 = smul.u32 64, %s10
      $region32: #{policy_network_forward.1} parent=27 // pred_fallthru
        _
    $region28: #{policy_network_forward.1} parent=5 // pred_fallthru
      _
    %p162 = scmp.le.s32.totalorder 1, %s10
    %p163 = scmp.lt.s32.totalorder %s10, 3
    %p164 = pnand %p162, %p163
    %p165 = pneg %p164
    // Predicated region
    $region33: #{policy_network_forward.1} parent=5 // pred_check
      _
    $region34: #{policy_network_forward.1} parent=5 // pred_check_branch
      %167 = sbr.rel (%p164) target = $region36
    $region35: #{policy_network_forward.1} parent=5 // pred_region
      %s168 = ssub.s32 %s10, 1
      %s169 = smul.u32 64, %s15
      %p170 = scmp.lt.s32.totalorder %s169, 127
      %s171 = scalar_select %p170, %s169, 127
      %s172 = smul.addr %s171, 8
      %s173 = scalar_lea.vmem %s0, %s172
      %p174 = pneg %p36
      %p175 = pneg %p33
      %p176 = pneg %p57
      %p177 = pneg %p54
      %p178 = pneg %p78
      %p179 = pneg %p75
      %p180 = pneg %p99
      %p181 = pneg %p96
      %p182 = pneg %p125
      %p183 = pneg %p122
      %s184 = smul.u32 64, %s15
      %p185 = scmp.lt.s32.totalorder %s184, 127
      %s186 = scalar_select %p185, %s184, 127
      %s187 = smul.addr %s186, 8
      %s188 = scalar_lea.vmem %s4, %s187
      %s189 = smul.u32 64, %s15
      %p190 = scmp.lt.s32.totalorder %s189, 127
      %s191 = scalar_select %p190, %s189, 127
      %s192 = smul.addr %s191, 8
      %s193 = scalar_lea.vmem %s0, %s192
      %s194 = smul.u32 64, %s15
      %s195 = smul.u32 64, %s15
      %p196 = scmp.lt.s32.totalorder %s195, 127
      %s197 = scalar_select %p196, %s195, 127
      %s198 = smul.addr %s197, 8
      %s199 = scalar_lea.vmem %s4, %s198
      %s200 = smul.u32 64, %s15
      %v201 = vld [vmem:[%s1] sm:$0xf]
      %v202 = vld [vmem:[%s2] sm:$0x1]
      %v203 = vld [vmem:[%s3] sm:$0xff]
      %v204 = vld [vmem:[%s3 + $0x8] sm:$0xff]
      %v205 = vld [vmem:[%s3 + $0x10] sm:$0xff]
      %v206 = vld [vmem:[%s3 + $0x18] sm:$0xff]
      %v207 = vld [vmem:[%s3 + $0x20] sm:$0xff]
      %v208 = vld [vmem:[%s3 + $0x28] sm:$0xff]
      %v209 = vld [vmem:[%s3 + $0x30] sm:$0xff]
      %v210 = vld [vmem:[%s3 + $0x38] sm:$0xff]
      %v211 = vld [vmem:[%s3 + $0x40] sm:$0xff]
      %v212 = vld [vmem:[%s3 + $0x48] sm:$0xff]
      %v213 = vld [vmem:[%s3 + $0x50] sm:$0xff]
      %v214 = vld [vmem:[%s3 + $0x58] sm:$0xff]
      %v215 = vld [vmem:[%s3 + $0x60] sm:$0xff]
      %v216 = vld [vmem:[%s3 + $0x68] sm:$0xff]
      %v217 = vld [vmem:[%s3 + $0x70] sm:$0xff]
      %v218 = vld [vmem:[%s3 + $0x78] sm:$0xff]
      %v219 = vld [vmem:[%s193] sm:$0xff]
      %v220 = vld [vmem:[%s193 + $0x8] sm:$0xff]
      %v221 = vld [vmem:[%s193 + $0x10] sm:$0xff]
      %v222 = vld [vmem:[%s193 + $0x18] sm:$0xff]
      %v223 = vld [vmem:[%s193 + $0x20] sm:$0xff]
      %v224 = vld [vmem:[%s193 + $0x28] sm:$0xff]
      %v225 = vld [vmem:[%s193 + $0x30] sm:$0xff]
      %v226 = vld [vmem:[%s193 + $0x38] sm:$0xff]
      %v227 = vld [vmem:[%s193 + $0x40] sm:$0xff]
      %v228 = vld [vmem:[%s193 + $0x48] sm:$0xff]
      %v229 = vld [vmem:[%s193 + $0x50] sm:$0xff]
      %v230 = vld [vmem:[%s193 + $0x58] sm:$0xff]
      %v231 = vld [vmem:[%s193 + $0x60] sm:$0xff]
      %v232 = vld [vmem:[%s193 + $0x68] sm:$0xff]
      %v233 = vld [vmem:[%s193 + $0x70] sm:$0xff]
      %v234 = vld [vmem:[%s193 + $0x78] sm:$0xff]
      %v235 = vld [vmem:[%s193 + $0x80] sm:$0xff]
      %v236 = vld [vmem:[%s193 + $0x88] sm:$0xff]
      %v237 = vld [vmem:[%s193 + $0x90] sm:$0xff]
      %v238 = vld [vmem:[%s193 + $0x98] sm:$0xff]
      %v239 = vld [vmem:[%s193 + $0xa0] sm:$0xff]
      %v240 = vld [vmem:[%s193 + $0xa8] sm:$0xff]
      %v241 = vld [vmem:[%s193 + $0xb0] sm:$0xff]
      %v242 = vld [vmem:[%s193 + $0xb8] sm:$0xff]
      %v243 = vld [vmem:[%s193 + $0xc0] sm:$0xff]
      %v244 = vld [vmem:[%s193 + $0xc8] sm:$0xff]
      %v245 = vld [vmem:[%s193 + $0xd0] sm:$0xff]
      %v246 = vld [vmem:[%s193 + $0xd8] sm:$0xff]
      %v247 = vld [vmem:[%s193 + $0xe0] sm:$0xff]
      %v248 = vld [vmem:[%s193 + $0xe8] sm:$0xff]
      %v249 = vld [vmem:[%s193 + $0xf0] sm:$0xff]
      %v250 = vld [vmem:[%s193 + $0xf8] sm:$0xff]
      %v252 = vperm.slane %v202, 0
      %vm254 = vcmask 31744
      %v256 = vsel %vm254, %v219, 0
      %v259 = vsel %vm254, %v220, 0
      %v262 = vsel %vm254, %v221, 0
      %v265 = vsel %vm254, %v222, 0
      %v268 = vsel %vm254, %v223, 0
      %v271 = vsel %vm254, %v224, 0
      %v274 = vsel %vm254, %v225, 0
      %v277 = vsel %vm254, %v226, 0
      %v280 = vsel %vm254, %v227, 0
      %v283 = vsel %vm254, %v228, 0
      %v286 = vsel %vm254, %v229, 0
      %v289 = vsel %vm254, %v230, 0
      %v292 = vsel %vm254, %v231, 0
      %v295 = vsel %vm254, %v232, 0
      %v298 = vsel %vm254, %v233, 0
      %v301 = vsel %vm254, %v234, 0
      %v304 = vsel %vm254, %v235, 0
      %v307 = vsel %vm254, %v236, 0
      %v310 = vsel %vm254, %v237, 0
      %v313 = vsel %vm254, %v238, 0
      %v316 = vsel %vm254, %v239, 0
      %v319 = vsel %vm254, %v240, 0
      %v322 = vsel %vm254, %v241, 0
      %v325 = vsel %vm254, %v242, 0
      %v328 = vsel %vm254, %v243, 0
      %v331 = vsel %vm254, %v244, 0
      %v334 = vsel %vm254, %v245, 0
      %v337 = vsel %vm254, %v246, 0
      %v340 = vsel %vm254, %v247, 0
      %v343 = vsel %vm254, %v248, 0
      %v346 = vsel %vm254, %v249, 0
      %v349 = vsel %vm254, %v250, 0
      %vm351 = vcmask 1043456
      %v353 = vsel %vm351, %v201, 0
      %355 = vmatpush.msra.mxu0 0.0
      %356 = vmatpush.msra.mxu0 0.0
      %357 = vmatpush.msra.mxu0 0.0
      %358 = vmatpush.msra.mxu0 0.0
      %359 = vmatpush.msra.mxu0 0.0
      %360 = vmatpush.msra.mxu0 0.0
      %361 = vmatpush.msra.mxu0 0.0
      %362 = vmatpush.msra.mxu0 0.0
      %363 = vmatpush.msra.mxu0 0.0
      %364 = vmatpush.msra.mxu0 0.0
      %365 = vmatpush.msra.mxu0 0.0
      %366 = vmatpush.msra.mxu0 0.0
      %367 = vmatpush.msra.mxu0 0.0
      %368 = vmatpush.msra.mxu0 0.0
      %369 = vmatpush.msra.mxu0 0.0
      %370 = vmatpush.msra.mxu0 %v353
      %371 = vmatmul.f32.gmra.mxu0 %v256
      %v372 = vpop.f32.mrf.mxu0
      %v373 = vadd.f32 %v252, %v372
      %374 = vmatmul.f32.gmra.mxu0 %v259
      %v375 = vpop.f32.mrf.mxu0
      %v376 = vadd.f32 %v252, %v375
      %377 = vmatmul.f32.gmra.mxu0 %v262
      %v378 = vpop.f32.mrf.mxu0
      %v379 = vadd.f32 %v252, %v378
      %380 = vmatmul.f32.gmra.mxu0 %v265
      %v381 = vpop.f32.mrf.mxu0
      %v382 = vadd.f32 %v252, %v381
      %383 = vmatmul.f32.gmra.mxu0 %v268
      %v384 = vpop.f32.mrf.mxu0
      %v385 = vadd.f32 %v252, %v384
      %386 = vmatmul.f32.gmra.mxu0 %v271
      %v387 = vpop.f32.mrf.mxu0
      %v388 = vadd.f32 %v252, %v387
      %389 = vmatmul.f32.gmra.mxu0 %v274
      %v390 = vpop.f32.mrf.mxu0
      %v391 = vadd.f32 %v252, %v390
      %392 = vmatmul.f32.gmra.mxu0 %v277
      %v393 = vpop.f32.mrf.mxu0
      %v394 = vadd.f32 %v252, %v393
      %395 = vmatmul.f32.gmra.mxu0 %v280
      %v396 = vpop.f32.mrf.mxu0
      %v397 = vadd.f32 %v252, %v396
      %398 = vmatmul.f32.gmra.mxu0 %v283
      %v399 = vpop.f32.mrf.mxu0
      %v400 = vadd.f32 %v252, %v399
      %401 = vmatmul.f32.gmra.mxu0 %v286
      %v402 = vpop.f32.mrf.mxu0
      %v403 = vadd.f32 %v252, %v402
      %404 = vmatmul.f32.gmra.mxu0 %v289
      %v405 = vpop.f32.mrf.mxu0
      %v406 = vadd.f32 %v252, %v405
      %407 = vmatmul.f32.gmra.mxu0 %v292
      %v408 = vpop.f32.mrf.mxu0
      %v409 = vadd.f32 %v252, %v408
      %410 = vmatmul.f32.gmra.mxu0 %v295
      %v411 = vpop.f32.mrf.mxu0
      %v412 = vadd.f32 %v252, %v411
      %413 = vmatmul.f32.gmra.mxu0 %v298
      %v414 = vpop.f32.mrf.mxu0
      %v415 = vadd.f32 %v252, %v414
      %416 = vmatmul.f32.gmra.mxu0 %v301
      %v417 = vpop.f32.mrf.mxu0
      %v418 = vadd.f32 %v252, %v417
      %419 = vmatmul.f32.gmra.mxu0 %v304
      %v420 = vpop.f32.mrf.mxu0
      %v421 = vadd.f32 %v252, %v420
      %422 = vmatmul.f32.gmra.mxu0 %v307
      %v423 = vpop.f32.mrf.mxu0
      %v424 = vadd.f32 %v252, %v423
      %425 = vmatmul.f32.gmra.mxu0 %v310
      %v426 = vpop.f32.mrf.mxu0
      %v427 = vadd.f32 %v252, %v426
      %428 = vmatmul.f32.gmra.mxu0 %v313
      %v429 = vpop.f32.mrf.mxu0
      %v430 = vadd.f32 %v252, %v429
      %431 = vmatmul.f32.gmra.mxu0 %v316
      %v432 = vpop.f32.mrf.mxu0
      %v433 = vadd.f32 %v252, %v432
      %434 = vmatmul.f32.gmra.mxu0 %v319
      %v435 = vpop.f32.mrf.mxu0
      %v436 = vadd.f32 %v252, %v435
      %437 = vmatmul.f32.gmra.mxu0 %v322
      %v438 = vpop.f32.mrf.mxu0
      %v439 = vadd.f32 %v252, %v438
      %440 = vmatmul.f32.gmra.mxu0 %v325
      %v441 = vpop.f32.mrf.mxu0
      %v442 = vadd.f32 %v252, %v441
      %443 = vmatmul.f32.gmra.mxu0 %v328
      %v444 = vpop.f32.mrf.mxu0
      %v445 = vadd.f32 %v252, %v444
      %446 = vmatmul.f32.gmra.mxu0 %v331
      %v447 = vpop.f32.mrf.mxu0
      %v448 = vadd.f32 %v252, %v447
      %449 = vmatmul.f32.gmra.mxu0 %v334
      %v450 = vpop.f32.mrf.mxu0
      %v451 = vadd.f32 %v252, %v450
      %452 = vmatmul.f32.gmra.mxu0 %v337
      %v453 = vpop.f32.mrf.mxu0
      %v454 = vadd.f32 %v252, %v453
      %455 = vmatmul.f32.gmra.mxu0 %v340
      %v456 = vpop.f32.mrf.mxu0
      %v457 = vadd.f32 %v252, %v456
      %458 = vmatmul.f32.gmra.mxu0 %v343
      %v459 = vpop.f32.mrf.mxu0
      %v460 = vadd.f32 %v252, %v459
      %461 = vmatmul.f32.gmra.mxu0 %v346
      %v462 = vpop.f32.mrf.mxu0
      %v463 = vadd.f32 %v252, %v462
      %464 = vmatmul.f32.gmra.mxu0 %v349
      %v465 = vpop.f32.mrf.mxu0
      %v466 = vadd.f32 %v252, %v465
      %467 = vdwg.mxu0
      %v468 = vmax.f32 %v373, 0.0
      %v469 = vmax.f32 %v376, 0.0
      %v470 = vmax.f32 %v379, 0.0
      %v471 = vmax.f32 %v382, 0.0
      %v472 = vmax.f32 %v385, 0.0
      %v473 = vmax.f32 %v388, 0.0
      %v474 = vmax.f32 %v391, 0.0
      %v475 = vmax.f32 %v394, 0.0
      %v476 = vmax.f32 %v397, 0.0
      %v477 = vmax.f32 %v400, 0.0
      %v478 = vmax.f32 %v403, 0.0
      %v479 = vmax.f32 %v406, 0.0
      %v480 = vmax.f32 %v409, 0.0
      %v481 = vmax.f32 %v412, 0.0
      %v482 = vmax.f32 %v415, 0.0
      %v483 = vmax.f32 %v418, 0.0
      %v484 = vmax.f32 %v421, 0.0
      %v485 = vmax.f32 %v424, 0.0
      %v486 = vmax.f32 %v427, 0.0
      %v487 = vmax.f32 %v430, 0.0
      %v488 = vmax.f32 %v433, 0.0
      %v489 = vmax.f32 %v436, 0.0
      %v490 = vmax.f32 %v439, 0.0
      %v491 = vmax.f32 %v442, 0.0
      %v492 = vmax.f32 %v445, 0.0
      %v493 = vmax.f32 %v448, 0.0
      %v494 = vmax.f32 %v451, 0.0
      %v495 = vmax.f32 %v454, 0.0
      %v496 = vmax.f32 %v457, 0.0
      %v497 = vmax.f32 %v460, 0.0
      %v498 = vmax.f32 %v463, 0.0
      %v499 = vmax.f32 %v466, 0.0
      %500 = vmatpush.msra.mxu0 %v218
      %501 = vmatpush.msra.mxu0 %v217
      %502 = vmatpush.msra.mxu0 %v216
      %503 = vmatpush.msra.mxu0 %v215
      %504 = vmatpush.msra.mxu0 %v214
      %505 = vmatpush.msra.mxu0 %v213
      %506 = vmatpush.msra.mxu0 %v212
      %507 = vmatpush.msra.mxu0 %v211
      %508 = vmatpush.msra.mxu0 %v210
      %509 = vmatpush.msra.mxu0 %v209
      %510 = vmatpush.msra.mxu0 %v208
      %511 = vmatpush.msra.mxu0 %v207
      %512 = vmatpush.msra.mxu0 %v206
      %513 = vmatpush.msra.mxu0 %v205
      %514 = vmatpush.msra.mxu0 %v204
      %515 = vmatpush.msra.mxu0 %v203
      %516 = vmatmul.f32.gmra.mxu0 %v468
      %v517 = vpop.f32.mrf.mxu0
      %v518 = vadd.f32 0.0, %v517
      %519 = vmatmul.f32.gmra.mxu0 %v469
      %v520 = vpop.f32.mrf.mxu0
      %v521 = vadd.f32 0.0, %v520
      %522 = vmatmul.f32.gmra.mxu0 %v470
      %v523 = vpop.f32.mrf.mxu0
      %v524 = vadd.f32 0.0, %v523
      %525 = vmatmul.f32.gmra.mxu0 %v471
      %v526 = vpop.f32.mrf.mxu0
      %v527 = vadd.f32 0.0, %v526
      %528 = vmatmul.f32.gmra.mxu0 %v472
      %v529 = vpop.f32.mrf.mxu0
      %v530 = vadd.f32 0.0, %v529
      %531 = vmatmul.f32.gmra.mxu0 %v473
      %v532 = vpop.f32.mrf.mxu0
      %v533 = vadd.f32 0.0, %v532
      %534 = vmatmul.f32.gmra.mxu0 %v474
      %v535 = vpop.f32.mrf.mxu0
      %v536 = vadd.f32 0.0, %v535
      %537 = vmatmul.f32.gmra.mxu0 %v475
      %v538 = vpop.f32.mrf.mxu0
      %v539 = vadd.f32 0.0, %v538
      %540 = vmatmul.f32.gmra.mxu0 %v476
      %v541 = vpop.f32.mrf.mxu0
      %v542 = vadd.f32 0.0, %v541
      %543 = vmatmul.f32.gmra.mxu0 %v477
      %v544 = vpop.f32.mrf.mxu0
      %v545 = vadd.f32 0.0, %v544
      %546 = vmatmul.f32.gmra.mxu0 %v478
      %v547 = vpop.f32.mrf.mxu0
      %v548 = vadd.f32 0.0, %v547
      %549 = vmatmul.f32.gmra.mxu0 %v479
      %v550 = vpop.f32.mrf.mxu0
      %v551 = vadd.f32 0.0, %v550
      %552 = vmatmul.f32.gmra.mxu0 %v480
      %v553 = vpop.f32.mrf.mxu0
      %v554 = vadd.f32 0.0, %v553
      %555 = vmatmul.f32.gmra.mxu0 %v481
      %v556 = vpop.f32.mrf.mxu0
      %v557 = vadd.f32 0.0, %v556
      %558 = vmatmul.f32.gmra.mxu0 %v482
      %v559 = vpop.f32.mrf.mxu0
      %v560 = vadd.f32 0.0, %v559
      %561 = vmatmul.f32.gmra.mxu0 %v483
      %v562 = vpop.f32.mrf.mxu0
      %v563 = vadd.f32 0.0, %v562
      %564 = vmatmul.f32.gmra.mxu0 %v484
      %v565 = vpop.f32.mrf.mxu0
      %v566 = vadd.f32 0.0, %v565
      %567 = vmatmul.f32.gmra.mxu0 %v485
      %v568 = vpop.f32.mrf.mxu0
      %v569 = vadd.f32 0.0, %v568
      %570 = vmatmul.f32.gmra.mxu0 %v486
      %v571 = vpop.f32.mrf.mxu0
      %v572 = vadd.f32 0.0, %v571
      %573 = vmatmul.f32.gmra.mxu0 %v487
      %v574 = vpop.f32.mrf.mxu0
      %v575 = vadd.f32 0.0, %v574
      %576 = vmatmul.f32.gmra.mxu0 %v488
      %v577 = vpop.f32.mrf.mxu0
      %v578 = vadd.f32 0.0, %v577
      %579 = vmatmul.f32.gmra.mxu0 %v489
      %v580 = vpop.f32.mrf.mxu0
      %v581 = vadd.f32 0.0, %v580
      %582 = vmatmul.f32.gmra.mxu0 %v490
      %v583 = vpop.f32.mrf.mxu0
      %v584 = vadd.f32 0.0, %v583
      %585 = vmatmul.f32.gmra.mxu0 %v491
      %v586 = vpop.f32.mrf.mxu0
      %v587 = vadd.f32 0.0, %v586
      %588 = vmatmul.f32.gmra.mxu0 %v492
      %v589 = vpop.f32.mrf.mxu0
      %v590 = vadd.f32 0.0, %v589
      %591 = vmatmul.f32.gmra.mxu0 %v493
      %v592 = vpop.f32.mrf.mxu0
      %v593 = vadd.f32 0.0, %v592
      %594 = vmatmul.f32.gmra.mxu0 %v494
      %v595 = vpop.f32.mrf.mxu0
      %v596 = vadd.f32 0.0, %v595
      %597 = vmatmul.f32.gmra.mxu0 %v495
      %v598 = vpop.f32.mrf.mxu0
      %v599 = vadd.f32 0.0, %v598
      %600 = vmatmul.f32.gmra.mxu0 %v496
      %v601 = vpop.f32.mrf.mxu0
      %v602 = vadd.f32 0.0, %v601
      %603 = vmatmul.f32.gmra.mxu0 %v497
      %v604 = vpop.f32.mrf.mxu0
      %v605 = vadd.f32 0.0, %v604
      %606 = vmatmul.f32.gmra.mxu0 %v498
      %v607 = vpop.f32.mrf.mxu0
      %v608 = vadd.f32 0.0, %v607
      %609 = vmatmul.f32.gmra.mxu0 %v499
      %v610 = vpop.f32.mrf.mxu0
      %v611 = vadd.f32 0.0, %v610
      %612 = vdwg.mxu0
      %vm613 = vcmask 15360
      %614 = vst.msk [vmem:[%s199] sm:$0xff] %vm613, %v518
      %615 = vst.msk [vmem:[%s199 + $0x8] sm:$0xff] %vm613, %v521
      %616 = vst.msk [vmem:[%s199 + $0x10] sm:$0xff] %vm613, %v524
      %617 = vst.msk [vmem:[%s199 + $0x18] sm:$0xff] %vm613, %v527
      %618 = vst.msk [vmem:[%s199 + $0x20] sm:$0xff] %vm613, %v530
      %619 = vst.msk [vmem:[%s199 + $0x28] sm:$0xff] %vm613, %v533
      %620 = vst.msk [vmem:[%s199 + $0x30] sm:$0xff] %vm613, %v536
      %621 = vst.msk [vmem:[%s199 + $0x38] sm:$0xff] %vm613, %v539
      %622 = vst.msk [vmem:[%s199 + $0x40] sm:$0xff] %vm613, %v542
      %623 = vst.msk [vmem:[%s199 + $0x48] sm:$0xff] %vm613, %v545
      %624 = vst.msk [vmem:[%s199 + $0x50] sm:$0xff] %vm613, %v548
      %625 = vst.msk [vmem:[%s199 + $0x58] sm:$0xff] %vm613, %v551
      %626 = vst.msk [vmem:[%s199 + $0x60] sm:$0xff] %vm613, %v554
      %627 = vst.msk [vmem:[%s199 + $0x68] sm:$0xff] %vm613, %v557
      %628 = vst.msk [vmem:[%s199 + $0x70] sm:$0xff] %vm613, %v560
      %629 = vst.msk [vmem:[%s199 + $0x78] sm:$0xff] %vm613, %v563
      %630 = vst.msk [vmem:[%s199 + $0x80] sm:$0xff] %vm613, %v566
      %631 = vst.msk [vmem:[%s199 + $0x88] sm:$0xff] %vm613, %v569
      %632 = vst.msk [vmem:[%s199 + $0x90] sm:$0xff] %vm613, %v572
      %633 = vst.msk [vmem:[%s199 + $0x98] sm:$0xff] %vm613, %v575
      %634 = vst.msk [vmem:[%s199 + $0xa0] sm:$0xff] %vm613, %v578
      %635 = vst.msk [vmem:[%s199 + $0xa8] sm:$0xff] %vm613, %v581
      %636 = vst.msk [vmem:[%s199 + $0xb0] sm:$0xff] %vm613, %v584
      %637 = vst.msk [vmem:[%s199 + $0xb8] sm:$0xff] %vm613, %v587
      %638 = vst.msk [vmem:[%s199 + $0xc0] sm:$0xff] %vm613, %v590
      %639 = vst.msk [vmem:[%s199 + $0xc8] sm:$0xff] %vm613, %v593
      %640 = vst.msk [vmem:[%s199 + $0xd0] sm:$0xff] %vm613, %v596
      %641 = vst.msk [vmem:[%s199 + $0xd8] sm:$0xff] %vm613, %v599
      %642 = vst.msk [vmem:[%s199 + $0xe0] sm:$0xff] %vm613, %v602
      %643 = vst.msk [vmem:[%s199 + $0xe8] sm:$0xff] %vm613, %v605
      %644 = vst.msk [vmem:[%s199 + $0xf0] sm:$0xff] %vm613, %v608
      %645 = vst.msk [vmem:[%s199 + $0xf8] sm:$0xff] %vm613, %v611
      %s646 = scalar_lea.vmem %s193, 256
      %v647 = vld [vmem:[%s646] sm:$0xff]
      %v648 = vld [vmem:[%s646 + $0x8] sm:$0xff]
      %v649 = vld [vmem:[%s646 + $0x10] sm:$0xff]
      %v650 = vld [vmem:[%s646 + $0x18] sm:$0xff]
      %v651 = vld [vmem:[%s646 + $0x20] sm:$0xff]
      %v652 = vld [vmem:[%s646 + $0x28] sm:$0xff]
      %v653 = vld [vmem:[%s646 + $0x30] sm:$0xff]
      %v654 = vld [vmem:[%s646 + $0x38] sm:$0xff]
      %v655 = vld [vmem:[%s646 + $0x40] sm:$0xff]
      %v656 = vld [vmem:[%s646 + $0x48] sm:$0xff]
      %v657 = vld [vmem:[%s646 + $0x50] sm:$0xff]
      %v658 = vld [vmem:[%s646 + $0x58] sm:$0xff]
      %v659 = vld [vmem:[%s646 + $0x60] sm:$0xff]
      %v660 = vld [vmem:[%s646 + $0x68] sm:$0xff]
      %v661 = vld [vmem:[%s646 + $0x70] sm:$0xff]
      %v662 = vld [vmem:[%s646 + $0x78] sm:$0xff]
      %v663 = vld [vmem:[%s646 + $0x80] sm:$0xff]
      %v664 = vld [vmem:[%s646 + $0x88] sm:$0xff]
      %v665 = vld [vmem:[%s646 + $0x90] sm:$0xff]
      %v666 = vld [vmem:[%s646 + $0x98] sm:$0xff]
      %v667 = vld [vmem:[%s646 + $0xa0] sm:$0xff]
      %v668 = vld [vmem:[%s646 + $0xa8] sm:$0xff]
      %v669 = vld [vmem:[%s646 + $0xb0] sm:$0xff]
      %v670 = vld [vmem:[%s646 + $0xb8] sm:$0xff]
      %v671 = vld [vmem:[%s646 + $0xc0] sm:$0xff]
      %v672 = vld [vmem:[%s646 + $0xc8] sm:$0xff]
      %v673 = vld [vmem:[%s646 + $0xd0] sm:$0xff]
      %v674 = vld [vmem:[%s646 + $0xd8] sm:$0xff]
      %v675 = vld [vmem:[%s646 + $0xe0] sm:$0xff]
      %v676 = vld [vmem:[%s646 + $0xe8] sm:$0xff]
      %v677 = vld [vmem:[%s646 + $0xf0] sm:$0xff]
      %v678 = vld [vmem:[%s646 + $0xf8] sm:$0xff]
      %v680 = vsel %vm254, %v647, 0
      %v683 = vsel %vm254, %v648, 0
      %v686 = vsel %vm254, %v649, 0
      %v689 = vsel %vm254, %v650, 0
      %v692 = vsel %vm254, %v651, 0
      %v695 = vsel %vm254, %v652, 0
      %v698 = vsel %vm254, %v653, 0
      %v701 = vsel %vm254, %v654, 0
      %v704 = vsel %vm254, %v655, 0
      %v707 = vsel %vm254, %v656, 0
      %v710 = vsel %vm254, %v657, 0
      %v713 = vsel %vm254, %v658, 0
      %v716 = vsel %vm254, %v659, 0
      %v719 = vsel %vm254, %v660, 0
      %v722 = vsel %vm254, %v661, 0
      %v725 = vsel %vm254, %v662, 0
      %v728 = vsel %vm254, %v663, 0
      %v731 = vsel %vm254, %v664, 0
      %v734 = vsel %vm254, %v665, 0
      %v737 = vsel %vm254, %v666, 0
      %v740 = vsel %vm254, %v667, 0
      %v743 = vsel %vm254, %v668, 0
      %v746 = vsel %vm254, %v669, 0
      %v749 = vsel %vm254, %v670, 0
      %v752 = vsel %vm254, %v671, 0
      %v755 = vsel %vm254, %v672, 0
      %v758 = vsel %vm254, %v673, 0
      %v761 = vsel %vm254, %v674, 0
      %v764 = vsel %vm254, %v675, 0
      %v767 = vsel %vm254, %v676, 0
      %v770 = vsel %vm254, %v677, 0
      %v773 = vsel %vm254, %v678, 0
      %775 = vmatpush.msra.mxu0 0.0
      %776 = vmatpush.msra.mxu0 0.0
      %777 = vmatpush.msra.mxu0 0.0
      %778 = vmatpush.msra.mxu0 0.0
      %779 = vmatpush.msra.mxu0 0.0
      %780 = vmatpush.msra.mxu0 0.0
      %781 = vmatpush.msra.mxu0 0.0
      %782 = vmatpush.msra.mxu0 0.0
      %783 = vmatpush.msra.mxu0 0.0
      %784 = vmatpush.msra.mxu0 0.0
      %785 = vmatpush.msra.mxu0 0.0
      %786 = vmatpush.msra.mxu0 0.0
      %787 = vmatpush.msra.mxu0 0.0
      %788 = vmatpush.msra.mxu0 0.0
      %789 = vmatpush.msra.mxu0 0.0
      %790 = vmatpush.msra.mxu0 %v353
      %791 = vmatmul.f32.gmra.mxu0 %v680
      %v792 = vpop.f32.mrf.mxu0
      %v793 = vadd.f32 %v252, %v792
      %794 = vmatmul.f32.gmra.mxu0 %v683
      %v795 = vpop.f32.mrf.mxu0
      %v796 = vadd.f32 %v252, %v795
      %797 = vmatmul.f32.gmra.mxu0 %v686
      %v798 = vpop.f32.mrf.mxu0
      %v799 = vadd.f32 %v252, %v798
      %800 = vmatmul.f32.gmra.mxu0 %v689
      %v801 = vpop.f32.mrf.mxu0
      %v802 = vadd.f32 %v252, %v801
      %803 = vmatmul.f32.gmra.mxu0 %v692
      %v804 = vpop.f32.mrf.mxu0
      %v805 = vadd.f32 %v252, %v804
      %806 = vmatmul.f32.gmra.mxu0 %v695
      %v807 = vpop.f32.mrf.mxu0
      %v808 = vadd.f32 %v252, %v807
      %809 = vmatmul.f32.gmra.mxu0 %v698
      %v810 = vpop.f32.mrf.mxu0
      %v811 = vadd.f32 %v252, %v810
      %812 = vmatmul.f32.gmra.mxu0 %v701
      %v813 = vpop.f32.mrf.mxu0
      %v814 = vadd.f32 %v252, %v813
      %815 = vmatmul.f32.gmra.mxu0 %v704
      %v816 = vpop.f32.mrf.mxu0
      %v817 = vadd.f32 %v252, %v816
      %818 = vmatmul.f32.gmra.mxu0 %v707
      %v819 = vpop.f32.mrf.mxu0
      %v820 = vadd.f32 %v252, %v819
      %821 = vmatmul.f32.gmra.mxu0 %v710
      %v822 = vpop.f32.mrf.mxu0
      %v823 = vadd.f32 %v252, %v822
      %824 = vmatmul.f32.gmra.mxu0 %v713
      %v825 = vpop.f32.mrf.mxu0
      %v826 = vadd.f32 %v252, %v825
      %827 = vmatmul.f32.gmra.mxu0 %v716
      %v828 = vpop.f32.mrf.mxu0
      %v829 = vadd.f32 %v252, %v828
      %830 = vmatmul.f32.gmra.mxu0 %v719
      %v831 = vpop.f32.mrf.mxu0
      %v832 = vadd.f32 %v252, %v831
      %833 = vmatmul.f32.gmra.mxu0 %v722
      %v834 = vpop.f32.mrf.mxu0
      %v835 = vadd.f32 %v252, %v834
      %836 = vmatmul.f32.gmra.mxu0 %v725
      %v837 = vpop.f32.mrf.mxu0
      %v838 = vadd.f32 %v252, %v837
      %839 = vmatmul.f32.gmra.mxu0 %v728
      %v840 = vpop.f32.mrf.mxu0
      %v841 = vadd.f32 %v252, %v840
      %842 = vmatmul.f32.gmra.mxu0 %v731
      %v843 = vpop.f32.mrf.mxu0
      %v844 = vadd.f32 %v252, %v843
      %845 = vmatmul.f32.gmra.mxu0 %v734
      %v846 = vpop.f32.mrf.mxu0
      %v847 = vadd.f32 %v252, %v846
      %848 = vmatmul.f32.gmra.mxu0 %v737
      %v849 = vpop.f32.mrf.mxu0
      %v850 = vadd.f32 %v252, %v849
      %851 = vmatmul.f32.gmra.mxu0 %v740
      %v852 = vpop.f32.mrf.mxu0
      %v853 = vadd.f32 %v252, %v852
      %854 = vmatmul.f32.gmra.mxu0 %v743
      %v855 = vpop.f32.mrf.mxu0
      %v856 = vadd.f32 %v252, %v855
      %857 = vmatmul.f32.gmra.mxu0 %v746
      %v858 = vpop.f32.mrf.mxu0
      %v859 = vadd.f32 %v252, %v858
      %860 = vmatmul.f32.gmra.mxu0 %v749
      %v861 = vpop.f32.mrf.mxu0
      %v862 = vadd.f32 %v252, %v861
      %863 = vmatmul.f32.gmra.mxu0 %v752
      %v864 = vpop.f32.mrf.mxu0
      %v865 = vadd.f32 %v252, %v864
      %866 = vmatmul.f32.gmra.mxu0 %v755
      %v867 = vpop.f32.mrf.mxu0
      %v868 = vadd.f32 %v252, %v867
      %869 = vmatmul.f32.gmra.mxu0 %v758
      %v870 = vpop.f32.mrf.mxu0
      %v871 = vadd.f32 %v252, %v870
      %872 = vmatmul.f32.gmra.mxu0 %v761
      %v873 = vpop.f32.mrf.mxu0
      %v874 = vadd.f32 %v252, %v873
      %875 = vmatmul.f32.gmra.mxu0 %v764
      %v876 = vpop.f32.mrf.mxu0
      %v877 = vadd.f32 %v252, %v876
      %878 = vmatmul.f32.gmra.mxu0 %v767
      %v879 = vpop.f32.mrf.mxu0
      %v880 = vadd.f32 %v252, %v879
      %881 = vmatmul.f32.gmra.mxu0 %v770
      %v882 = vpop.f32.mrf.mxu0
      %v883 = vadd.f32 %v252, %v882
      %884 = vmatmul.f32.gmra.mxu0 %v773
      %v885 = vpop.f32.mrf.mxu0
      %v886 = vadd.f32 %v252, %v885
      %887 = vdwg.mxu0
      %v888 = vmax.f32 %v793, 0.0
      %v889 = vmax.f32 %v796, 0.0
      %v890 = vmax.f32 %v799, 0.0
      %v891 = vmax.f32 %v802, 0.0
      %v892 = vmax.f32 %v805, 0.0
      %v893 = vmax.f32 %v808, 0.0
      %v894 = vmax.f32 %v811, 0.0
      %v895 = vmax.f32 %v814, 0.0
      %v896 = vmax.f32 %v817, 0.0
      %v897 = vmax.f32 %v820, 0.0
      %v898 = vmax.f32 %v823, 0.0
      %v899 = vmax.f32 %v826, 0.0
      %v900 = vmax.f32 %v829, 0.0
      %v901 = vmax.f32 %v832, 0.0
      %v902 = vmax.f32 %v835, 0.0
      %v903 = vmax.f32 %v838, 0.0
      %v904 = vmax.f32 %v841, 0.0
      %v905 = vmax.f32 %v844, 0.0
      %v906 = vmax.f32 %v847, 0.0
      %v907 = vmax.f32 %v850, 0.0
      %v908 = vmax.f32 %v853, 0.0
      %v909 = vmax.f32 %v856, 0.0
      %v910 = vmax.f32 %v859, 0.0
      %v911 = vmax.f32 %v862, 0.0
      %v912 = vmax.f32 %v865, 0.0
      %v913 = vmax.f32 %v868, 0.0
      %v914 = vmax.f32 %v871, 0.0
      %v915 = vmax.f32 %v874, 0.0
      %v916 = vmax.f32 %v877, 0.0
      %v917 = vmax.f32 %v880, 0.0
      %v918 = vmax.f32 %v883, 0.0
      %v919 = vmax.f32 %v886, 0.0
      %920 = vmatpush.msra.mxu0 %v218
      %921 = vmatpush.msra.mxu0 %v217
      %922 = vmatpush.msra.mxu0 %v216
      %923 = vmatpush.msra.mxu0 %v215
      %924 = vmatpush.msra.mxu0 %v214
      %925 = vmatpush.msra.mxu0 %v213
      %926 = vmatpush.msra.mxu0 %v212
      %927 = vmatpush.msra.mxu0 %v211
      %928 = vmatpush.msra.mxu0 %v210
      %929 = vmatpush.msra.mxu0 %v209
      %930 = vmatpush.msra.mxu0 %v208
      %931 = vmatpush.msra.mxu0 %v207
      %932 = vmatpush.msra.mxu0 %v206
      %933 = vmatpush.msra.mxu0 %v205
      %934 = vmatpush.msra.mxu0 %v204
      %935 = vmatpush.msra.mxu0 %v203
      %936 = vmatmul.f32.gmra.mxu0 %v888
      %v937 = vpop.f32.mrf.mxu0
      %v938 = vadd.f32 0.0, %v937
      %939 = vmatmul.f32.gmra.mxu0 %v889
      %v940 = vpop.f32.mrf.mxu0
      %v941 = vadd.f32 0.0, %v940
      %942 = vmatmul.f32.gmra.mxu0 %v890
      %v943 = vpop.f32.mrf.mxu0
      %v944 = vadd.f32 0.0, %v943
      %945 = vmatmul.f32.gmra.mxu0 %v891
      %v946 = vpop.f32.mrf.mxu0
      %v947 = vadd.f32 0.0, %v946
      %948 = vmatmul.f32.gmra.mxu0 %v892
      %v949 = vpop.f32.mrf.mxu0
      %v950 = vadd.f32 0.0, %v949
      %951 = vmatmul.f32.gmra.mxu0 %v893
      %v952 = vpop.f32.mrf.mxu0
      %v953 = vadd.f32 0.0, %v952
      %954 = vmatmul.f32.gmra.mxu0 %v894
      %v955 = vpop.f32.mrf.mxu0
      %v956 = vadd.f32 0.0, %v955
      %957 = vmatmul.f32.gmra.mxu0 %v895
      %v958 = vpop.f32.mrf.mxu0
      %v959 = vadd.f32 0.0, %v958
      %960 = vmatmul.f32.gmra.mxu0 %v896
      %v961 = vpop.f32.mrf.mxu0
      %v962 = vadd.f32 0.0, %v961
      %963 = vmatmul.f32.gmra.mxu0 %v897
      %v964 = vpop.f32.mrf.mxu0
      %v965 = vadd.f32 0.0, %v964
      %966 = vmatmul.f32.gmra.mxu0 %v898
      %v967 = vpop.f32.mrf.mxu0
      %v968 = vadd.f32 0.0, %v967
      %969 = vmatmul.f32.gmra.mxu0 %v899
      %v970 = vpop.f32.mrf.mxu0
      %v971 = vadd.f32 0.0, %v970
      %972 = vmatmul.f32.gmra.mxu0 %v900
      %v973 = vpop.f32.mrf.mxu0
      %v974 = vadd.f32 0.0, %v973
      %975 = vmatmul.f32.gmra.mxu0 %v901
      %v976 = vpop.f32.mrf.mxu0
      %v977 = vadd.f32 0.0, %v976
      %978 = vmatmul.f32.gmra.mxu0 %v902
      %v979 = vpop.f32.mrf.mxu0
      %v980 = vadd.f32 0.0, %v979
      %981 = vmatmul.f32.gmra.mxu0 %v903
      %v982 = vpop.f32.mrf.mxu0
      %v983 = vadd.f32 0.0, %v982
      %984 = vmatmul.f32.gmra.mxu0 %v904
      %v985 = vpop.f32.mrf.mxu0
      %v986 = vadd.f32 0.0, %v985
      %987 = vmatmul.f32.gmra.mxu0 %v905
      %v988 = vpop.f32.mrf.mxu0
      %v989 = vadd.f32 0.0, %v988
      %990 = vmatmul.f32.gmra.mxu0 %v906
      %v991 = vpop.f32.mrf.mxu0
      %v992 = vadd.f32 0.0, %v991
      %993 = vmatmul.f32.gmra.mxu0 %v907
      %v994 = vpop.f32.mrf.mxu0
      %v995 = vadd.f32 0.0, %v994
      %996 = vmatmul.f32.gmra.mxu0 %v908
      %v997 = vpop.f32.mrf.mxu0
      %v998 = vadd.f32 0.0, %v997
      %999 = vmatmul.f32.gmra.mxu0 %v909
      %v1000 = vpop.f32.mrf.mxu0
      %v1001 = vadd.f32 0.0, %v1000
      %1002 = vmatmul.f32.gmra.mxu0 %v910
      %v1003 = vpop.f32.mrf.mxu0
      %v1004 = vadd.f32 0.0, %v1003
      %1005 = vmatmul.f32.gmra.mxu0 %v911
      %v1006 = vpop.f32.mrf.mxu0
      %v1007 = vadd.f32 0.0, %v1006
      %1008 = vmatmul.f32.gmra.mxu0 %v912
      %v1009 = vpop.f32.mrf.mxu0
      %v1010 = vadd.f32 0.0, %v1009
      %1011 = vmatmul.f32.gmra.mxu0 %v913
      %v1012 = vpop.f32.mrf.mxu0
      %v1013 = vadd.f32 0.0, %v1012
      %1014 = vmatmul.f32.gmra.mxu0 %v914
      %v1015 = vpop.f32.mrf.mxu0
      %v1016 = vadd.f32 0.0, %v1015
      %1017 = vmatmul.f32.gmra.mxu0 %v915
      %v1018 = vpop.f32.mrf.mxu0
      %v1019 = vadd.f32 0.0, %v1018
      %1020 = vmatmul.f32.gmra.mxu0 %v916
      %v1021 = vpop.f32.mrf.mxu0
      %v1022 = vadd.f32 0.0, %v1021
      %1023 = vmatmul.f32.gmra.mxu0 %v917
      %v1024 = vpop.f32.mrf.mxu0
      %v1025 = vadd.f32 0.0, %v1024
      %1026 = vmatmul.f32.gmra.mxu0 %v918
      %v1027 = vpop.f32.mrf.mxu0
      %v1028 = vadd.f32 0.0, %v1027
      %1029 = vmatmul.f32.gmra.mxu0 %v919
      %v1030 = vpop.f32.mrf.mxu0
      %v1031 = vadd.f32 0.0, %v1030
      %1032 = vdwg.mxu0
      %s1033 = scalar_lea.vmem %s199, 256
      %1034 = vst.msk [vmem:[%s1033] sm:$0xff] %vm613, %v938
      %1035 = vst.msk [vmem:[%s1033 + $0x8] sm:$0xff] %vm613, %v941
      %1036 = vst.msk [vmem:[%s1033 + $0x10] sm:$0xff] %vm613, %v944
      %1037 = vst.msk [vmem:[%s1033 + $0x18] sm:$0xff] %vm613, %v947
      %1038 = vst.msk [vmem:[%s1033 + $0x20] sm:$0xff] %vm613, %v950
      %1039 = vst.msk [vmem:[%s1033 + $0x28] sm:$0xff] %vm613, %v953
      %1040 = vst.msk [vmem:[%s1033 + $0x30] sm:$0xff] %vm613, %v956
      %1041 = vst.msk [vmem:[%s1033 + $0x38] sm:$0xff] %vm613, %v959
      %1042 = vst.msk [vmem:[%s1033 + $0x40] sm:$0xff] %vm613, %v962
      %1043 = vst.msk [vmem:[%s1033 + $0x48] sm:$0xff] %vm613, %v965
      %1044 = vst.msk [vmem:[%s1033 + $0x50] sm:$0xff] %vm613, %v968
      %1045 = vst.msk [vmem:[%s1033 + $0x58] sm:$0xff] %vm613, %v971
      %1046 = vst.msk [vmem:[%s1033 + $0x60] sm:$0xff] %vm613, %v974
      %1047 = vst.msk [vmem:[%s1033 + $0x68] sm:$0xff] %vm613, %v977
      %1048 = vst.msk [vmem:[%s1033 + $0x70] sm:$0xff] %vm613, %v980
      %1049 = vst.msk [vmem:[%s1033 + $0x78] sm:$0xff] %vm613, %v983
      %1050 = vst.msk [vmem:[%s1033 + $0x80] sm:$0xff] %vm613, %v986
      %1051 = vst.msk [vmem:[%s1033 + $0x88] sm:$0xff] %vm613, %v989
      %1052 = vst.msk [vmem:[%s1033 + $0x90] sm:$0xff] %vm613, %v992
      %1053 = vst.msk [vmem:[%s1033 + $0x98] sm:$0xff] %vm613, %v995
      %1054 = vst.msk [vmem:[%s1033 + $0xa0] sm:$0xff] %vm613, %v998
      %1055 = vst.msk [vmem:[%s1033 + $0xa8] sm:$0xff] %vm613, %v1001
      %1056 = vst.msk [vmem:[%s1033 + $0xb0] sm:$0xff] %vm613, %v1004
      %1057 = vst.msk [vmem:[%s1033 + $0xb8] sm:$0xff] %vm613, %v1007
      %1058 = vst.msk [vmem:[%s1033 + $0xc0] sm:$0xff] %vm613, %v1010
      %1059 = vst.msk [vmem:[%s1033 + $0xc8] sm:$0xff] %vm613, %v1013
      %1060 = vst.msk [vmem:[%s1033 + $0xd0] sm:$0xff] %vm613, %v1016
      %1061 = vst.msk [vmem:[%s1033 + $0xd8] sm:$0xff] %vm613, %v1019
      %1062 = vst.msk [vmem:[%s1033 + $0xe0] sm:$0xff] %vm613, %v1022
      %1063 = vst.msk [vmem:[%s1033 + $0xe8] sm:$0xff] %vm613, %v1025
      %1064 = vst.msk [vmem:[%s1033 + $0xf0] sm:$0xff] %vm613, %v1028
      %1065 = vst.msk [vmem:[%s1033 + $0xf8] sm:$0xff] %vm613, %v1031
      %s1066 = smul.u32 64, %s15
      %p1067 = scmp.lt.s32.totalorder %s1066, 127
      %s1068 = scalar_select %p1067, %s1066, 127
      %s1069 = smul.addr %s1068, 8
      %s1070 = scalar_lea.vmem %s4, %s1069
      // Predicated region
      $region37: #{policy_network_forward.1} parent=35 // pred_check
        %p1071 = pneg %p122
      $region38: #{policy_network_forward.1} parent=35 // pred_check_branch
        %1073 = sbr.rel (%p1071) target = $region40
      $region39: #{policy_network_forward.1} parent=35 // pred_region
        %s1074 = smul.u32 64, %s15
      $region40: #{policy_network_forward.1} parent=35 // pred_fallthru
        _
    $region36: #{policy_network_forward.1} parent=5 // pred_fallthru
      _
    %p1075 = scmp.le.s32.totalorder 2, %s10
    // Predicated region
    $region41: #{policy_network_forward.1} parent=5 // pred_check
      %p1076 = pneg %p1075
    $region42: #{policy_network_forward.1} parent=5 // pred_check_branch
      %1078 = sbr.rel (%p1076) target = $region44
    $region43: #{policy_network_forward.1} parent=5 // pred_region
      %s1079 = ssub.s32 %s10, 2
      // Predicated region
      $region45: #{policy_network_forward.1} parent=43 // pred_check
        %p1080 = pneg %p128
      $region46: #{policy_network_forward.1} parent=43 // pred_check_branch
        %1082 = sbr.rel (%p1080) target = $region48
      $region47: #{policy_network_forward.1} parent=43 // pred_region
        %s1083 = smul.u32 64, %s16
        %p1084 = scmp.lt.s32.totalorder %s1083, 127
        %s1085 = scalar_select %p1084, %s1083, 127
        %s1086 = smul.addr %s1085, 8
        %s1087 = scalar_lea.vmem %s4, %s1086
      $region48: #{policy_network_forward.1} parent=43 // pred_fallthru
        _
    $region44: #{policy_network_forward.1} parent=5 // pred_fallthru
      _
  $region6: #{policy_network_forward.1} parent=0 // loop_footer
    %s14 = sadd.s32 1, %s10
  $region7: #{policy_network_forward.1} parent=0 // loop_footer_branch
    %9 = sbr.rel target = $region3
  $region8: #{policy_network_forward.1} parent=0 // loop_exit
    _

</llo_original>
